<compile_context>
chip_gen: v6e
topology: v6e:2x2x1
jax: 0.10.0
libtpu: 0.0.40
codegen_flags: <defaults>
</compile_context>

<pallas_src>
import functools

import jax
import jax.numpy as jnp
from jax import lax
from jax.experimental import pallas as pl
from jax.experimental.pallas import tpu as pltpu

_LANE = 128
_VMEM_BUDGET = 40 * 1024 * 1024   # per-block budget; headroom under v7x's 64 MiB VMEM
_VMEM_LIMIT = 48 * 1024 * 1024    # scoped-VMEM limit (raises v5e 16 MiB / v6e 32 MiB default)


def _round_up(v, m):
    return (v + m - 1) // m * m


def _batch_mean_kernel(x_ref, o_ref, acc_ref, *, n_total, tile_n, mask_rows):
    # x_ref: (tile_n, tile_m) block; o_ref: (1, tile_m) block;
    # acc_ref: (1, tile_m) f32 scratch persisting across the batch-chunk axis.
    k = pl.program_id(1)

    @pl.when(k == 0)
    def _():
        acc_ref[...] = jnp.zeros_like(acc_ref)

    x = x_ref[...].astype(jnp.float32)
    if mask_rows:
        # Zero rows past the real batch size (only in the partial last batch chunk).
        row = lax.broadcasted_iota(jnp.int32, x.shape, 0) + k * tile_n
        x = jnp.where(row < n_total, x, 0.0)
    acc_ref[...] += jnp.sum(x, axis=0, keepdims=True)

    @pl.when(k == pl.num_programs(1) - 1)
    def _():
        o_ref[...] = (acc_ref[...] * (1.0 / n_total)).astype(o_ref.dtype)


def batch_avg(x):
    """Equivalent of torch.mean(x, dim=0) for an NCHW (or any-rank) tensor."""
    n = x.shape[0]
    out_shape = x.shape[1:]
    m = 1
    for d in out_shape:
        m *= d
    x2 = x.reshape(n, m)                      # (N, M): M is lane-dense; metadata-only reshape

    itemsize = jnp.dtype(x.dtype).itemsize
    # Sublane packing: 8 rows/vreg for 32-bit, 16 for 16-bit, 32 for 8-bit.
    sub = 8 * max(1, 4 // itemsize)
    n_pad = _round_up(n, sub)                 # VMEM footprint of the batch dim
    m_pad = _round_up(m, _LANE)

    # ---- tile selection from the VMEM budget (double-buffered input block) ----
    max_tile = _VMEM_BUDGET // (2 * n_pad * itemsize)
    if max_tile >= 512 or max_tile >= m_pad:
        # Whole batch fits in one N block: tile M as wide as the budget allows.
        tile_n = n
        tile_m = min(max((max_tile // _LANE) * _LANE, _LANE), m_pad)
    else:
        # Large-N fallback: keep the M tile wide (>= 512 lanes for HBM roofline)
        # and chunk the batch along a reduction grid axis instead.
        tile_m = min(512, m_pad)
        rows = _VMEM_BUDGET // (2 * tile_m * itemsize)
        tile_n = max((rows // sub) * sub, sub)
        if tile_n >= n:
            tile_n = n

    if tile_m >= m:
        tile_m = m                            # single full-width block (== full array dim, legal)

    grid_m = pl.cdiv(m, tile_m)
    grid_n = pl.cdiv(n, tile_n)

    # Big problem but only one M tile: split into >=2 parallel tiles so both
    # v7x TensorCores get work (also harmless on v5e/v6e).
    if grid_m == 1 and n * m * itemsize > (8 << 20) and m >= 2 * _LANE:
        tile_m = _round_up(pl.cdiv(m, 2), _LANE)
        grid_m = pl.cdiv(m, tile_m)

    mask_rows = (n % tile_n) != 0             # only pay the mask when a partial chunk exists
    kernel = functools.partial(
        _batch_mean_kernel, n_total=n, tile_n=tile_n, mask_rows=mask_rows)

    out2 = pl.pallas_call(
        kernel,
        out_shape=jax.ShapeDtypeStruct((1, m), x.dtype),
        grid_spec=pltpu.PrefetchScalarGridSpec(
            num_scalar_prefetch=0,
            grid=(grid_m, grid_n),            # reduction (batch-chunk) axis last
            in_specs=[pl.BlockSpec((tile_n, tile_m), lambda j, k: (k, j))],
            out_specs=pl.BlockSpec((1, tile_m), lambda j, k: (0, j)),
            scratch_shapes=[pltpu.VMEM((1, tile_m), jnp.float32)],
        ),
        compiler_params=pltpu.CompilerParams(
            dimension_semantics=("parallel", "arbitrary"),
            vmem_limit_bytes=_VMEM_LIMIT,
        ),
        cost_estimate=pl.CostEstimate(
            flops=n * m,
            transcendentals=0,
            bytes_accessed=(n * m + m) * itemsize,
        ),
    )(x2)

    return out2[0, :].reshape(out_shape)


if __name__ == "__main__":
    key = jax.random.PRNGKey(0)
    x = jax.random.normal(key, (2, 4, 16, 16), dtype=jnp.float32)

    y = batch_avg(x)
    jax.block_until_ready(y)

    # sanity check against plain JAX reference
    y_ref = jnp.mean(x, axis=0)
    assert y.shape == y_ref.shape == (4, 16, 16)
    assert jnp.allclose(y, y_ref, atol=1e-6, rtol=1e-6)

    print("KERNEL_OK")
</pallas_src>

<mosaic_0001>
module attributes {stable_mosaic.version = 11 : i64} {
  func.func @_batch_mean_kernel(%arg0: i32, %arg1: i32, %arg2: memref<2x1024xf32, #tpu.memory_space<vmem>>, %arg3: memref<1x1024xf32, #tpu.memory_space<vmem>>, %arg4: memref<1x1024xf32, #tpu.memory_space<vmem>>) attributes {dimension_semantics = [#tpu.dimension_semantics<parallel>, #tpu.dimension_semantics<arbitrary>], iteration_bounds = array<i64: 1, 1>, scalar_prefetch = 0 : i64, scratch_operands = 1 : i64, tpu.core_type = #tpu.core_type<tc>, window_params = [{transform_indices = @transform_0, window_bounds = array<i64: 2, 1024>}, {transform_indices = @transform_1, window_bounds = array<i64: 1, 1024>}]} {
    %c0_i32 = arith.constant 0 : i32
    %0 = arith.cmpi eq, %arg1, %c0_i32 : i32
    %1 = arith.extui %0 : i1 to i32
    %c0_i32_0 = arith.constant 0 : i32
    %2 = arith.cmpi ne, %1, %c0_i32_0 : i32
    scf.if %2 {
      %cst_8 = arith.constant 0.000000e+00 : f32
      %12 = vector.broadcast %cst_8 : f32 to vector<1x1024xf32>
      %c0_9 = arith.constant 0 : index
      %c0_10 = arith.constant 0 : index
      %13 = vector.load %arg4[%c0_9, %c0_10] : memref<1x1024xf32, #tpu.memory_space<vmem>>, vector<1x1024xf32>
      tpu.vector_store %arg4[%c0_9, %c0_10], %12 {strides = array<i32>} : memref<1x1024xf32, #tpu.memory_space<vmem>>, vector<1x1024xf32>,
    } else {
    }
    %c0 = arith.constant 0 : index
    %c0_1 = arith.constant 0 : index
    %3 = vector.load %arg2[%c0, %c0_1] : memref<2x1024xf32, #tpu.memory_space<vmem>>, vector<2x1024xf32>
    %c0_2 = arith.constant 0 : index
    %c0_3 = arith.constant 0 : index
    %4 = vector.load %arg4[%c0_2, %c0_3] : memref<1x1024xf32, #tpu.memory_space<vmem>>, vector<1x1024xf32>
    %cst = arith.constant dense<0.000000e+00> : vector<1024xf32>
    %5 = vector.multi_reduction <add>, %3, %cst [0] : vector<2x1024xf32> to vector<1024xf32>
    %6 = vector.shape_cast %5 : vector<1024xf32> to vector<1x1024xf32>
    %7 = arith.addf %4, %6 : vector<1x1024xf32>
    %c0_4 = arith.constant 0 : index
    %c0_5 = arith.constant 0 : index
    %8 = vector.load %arg4[%c0_4, %c0_5] : memref<1x1024xf32, #tpu.memory_space<vmem>>, vector<1x1024xf32>
    tpu.vector_store %arg4[%c0_4, %c0_5], %7 {strides = array<i32>} : memref<1x1024xf32, #tpu.memory_space<vmem>>, vector<1x1024xf32>,
    %c0_i32_6 = arith.constant 0 : i32
    %9 = arith.cmpi eq, %arg1, %c0_i32_6 : i32
    %10 = arith.extui %9 : i1 to i32
    %c0_i32_7 = arith.constant 0 : i32
    %11 = arith.cmpi ne, %10, %c0_i32_7 : i32
    scf.if %11 {
      %c0_8 = arith.constant 0 : index
      %c0_9 = arith.constant 0 : index
      %12 = vector.load %arg4[%c0_8, %c0_9] : memref<1x1024xf32, #tpu.memory_space<vmem>>, vector<1x1024xf32>
      %cst_10 = arith.constant 5.000000e-01 : f32
      %13 = vector.broadcast %cst_10 : f32 to vector<1x1024xf32>
      %14 = arith.mulf %12, %13 : vector<1x1024xf32>
      %c0_11 = arith.constant 0 : index
      %c0_12 = arith.constant 0 : index
      %15 = vector.load %arg3[%c0_11, %c0_12] : memref<1x1024xf32, #tpu.memory_space<vmem>>, vector<1x1024xf32>
      tpu.vector_store %arg3[%c0_11, %c0_12], %14 {strides = array<i32>} : memref<1x1024xf32, #tpu.memory_space<vmem>>, vector<1x1024xf32>,
    } else {
    }
    return
  }
  func.func @transform_0(%arg0: i32, %arg1: i32) -> (i32, i32) {
    %c0_i32 = arith.constant 0 : i32
    return %arg1, %arg0 : i32, i32
  }
  func.func @transform_1(%arg0: i32, %arg1: i32) -> (i32, i32) {
    %c0_i32 = arith.constant 0 : i32
    %c0_i32_0 = arith.constant 0 : i32
    return %c0_i32, %arg0 : i32, i32
  }
}

</mosaic_0001>

<llo_original>
// kernel: tpu_custom_call.1
$region0: #{tpu_custom_call.1}
  #allocation0 [shape = 'u32[]', space=smem, size = 0x4, offset = 0x4, fixed_abs, tag = 'smem constant byte address 0x4 - core index']
  #allocation1 [shape = 'u32[144,128]{1,0:T(1,128)}', space=vmem, size = 0x12000, scoped, tag = 'internal scratch']
  #allocation2 [shape = 'f32[1,1024]{1,0:T(1,128)}', space=vmem, size = 0x1000, scoped, tag = 'scratch operand']
  %s0 = inlined_call_operand.hbm [shape: f32[2,1024], index: 0, kind: input, shape index: {}]
  %s1 = inlined_call_operand.hbm [shape: f32[1,1024], index: 1, kind: output, shape index: {}]
  %s2 = sld [smem:[#allocation0]]
  $region26: #{tpu_custom_call.1} parent=0
    _
  %s4 = ssub.s32 1, %s2
  %s5 = scalar_select 0, %s4, %s2
  $region1: #{tpu_custom_call.1} parent=0
    #allocation3 [shape = 'u8[8192]{0}', space=vmem, size = 0x2000, scoped, tag = 'input window, operand 0, single buffered']
    #allocation4 [shape = 's32[1]{0}', space=sflag, size = 0x4, scoped, tag = 'scoped memory for tpu_custom_call.1']
    #allocation5 [shape = 's32[1]{0}', space=sflag, size = 0x4, scoped, tag = 'scoped memory for tpu_custom_call.1']
    #allocation6 [shape = 'u8[4096]{0}', space=vmem, size = 0x1000, scoped, tag = 'output window, operand 0, single buffered']
    %6 = vsyncpa [#allocation4], 0
    %7 = vsyncpa [#allocation5], 0
    // Predicated region
    $region2: #{tpu_custom_call.1} parent=1 // pred_check
      _
    $region3: #{tpu_custom_call.1} parent=1 // pred_check_branch
      %9 = sbr.rel (0) target = $region5
    $region4: #{tpu_custom_call.1} parent=1 // pred_region
      %s11 = ssub.s32 256, 256
      %12 = vsyncadd [#allocation4], %s11
      %s14 = sshll.u32 [#allocation3], 4
      %s15 = int_to_ptr.vmem [resolvable:$true] %s14
      %17 = dma.hbm_to_vmem [thread:$0]  %s0, 256, %s15, [#allocation4]
    $region5: #{tpu_custom_call.1} parent=1 // pred_fallthru
      _
    // Predicated region
    $region6: #{tpu_custom_call.1} parent=1 // pred_check
      _
    $region7: #{tpu_custom_call.1} parent=1 // pred_check_branch
      %19 = sbr.rel (0) target = $region9
    $region8: #{tpu_custom_call.1} parent=1 // pred_region
      %20 = dma.done [#allocation4], 256
    $region9: #{tpu_custom_call.1} parent=1 // pred_fallthru
      _
    %p21 = scmp.eq.s32.totalorder 0, 0
    // Predicated region
    $region10: #{tpu_custom_call.1} parent=1 // pred_check
      %p22 = pneg %p21
    $region11: #{tpu_custom_call.1} parent=1 // pred_check_branch
      %24 = sbr.rel (%p22) target = $region13
    $region12: #{tpu_custom_call.1} parent=1 // pred_region
      %25 = vst [vmem:[#allocation2] sm:$0xff] 0.0
    $region13: #{tpu_custom_call.1} parent=1 // pred_fallthru
      _
    %v26 = vld [vmem:[#allocation3] sm:$0xff]
    %v27 = vld [vmem:[#allocation3 + $0x8] sm:$0xff]
    %v28 = vld [vmem:[#allocation2] sm:$0xff]
    %v31 = vcombine.high %v26, %v26
    %v33 = vunpack.c.l.s4 1983009808
    %v34 = vunpack.c.0.s8 %v33
    %v35 = vlaneseq
    %v36 = vshrl.u32 %v35, 7
    %v37 = vsub.s32 %v34, %v36
    %v38 = vrot.slane %v26, %v37
    %v40 = vunpack.c.l.s4 1983009808
    %v41 = vunpack.c.0.s8 %v40
    %v42 = vlaneseq
    %v43 = vshrl.u32 %v42, 7
    %v44 = vsub.s32 %v41, %v43
    %v45 = vrot.slane %v31, %v44
    %v46 = vcombine.high %v38, %v38
    %v47 = vcombine.high %v45, %v45
    %v48 = vcombine.high %v27, %v27
    %v50 = vunpack.c.l.s4 1983009808
    %v51 = vunpack.c.0.s8 %v50
    %v52 = vlaneseq
    %v53 = vshrl.u32 %v52, 7
    %v54 = vsub.s32 %v51, %v53
    %v55 = vrot.slane %v27, %v54
    %v57 = vunpack.c.l.s4 1983009808
    %v58 = vunpack.c.0.s8 %v57
    %v59 = vlaneseq
    %v60 = vshrl.u32 %v59, 7
    %v61 = vsub.s32 %v58, %v60
    %v62 = vrot.slane %v48, %v61
    %v63 = vcombine.high %v55, %v55
    %v64 = vcombine.high %v62, %v62
    %vm73 = vcmask 1041408
    %v74 = vsel %vm73, %v38, 0.0
    %v75 = vrot.slane %v74, 4
    %v76 = vadd.f32 %v74, %v75
    %v77 = vrot.slane %v76, 2
    %v78 = vadd.f32 %v76, %v77
    %v79 = vrot.slane %v78, 1
    %v80 = vadd.f32 %v78, %v79
    %v81 = vsel %vm73, %v46, 0.0
    %v82 = vrot.slane %v81, 4
    %v83 = vadd.f32 %v81, %v82
    %v84 = vrot.slane %v83, 2
    %v85 = vadd.f32 %v83, %v84
    %v86 = vrot.slane %v85, 1
    %v87 = vadd.f32 %v85, %v86
    %v88 = vsel %vm73, %v45, 0.0
    %v89 = vrot.slane %v88, 4
    %v90 = vadd.f32 %v88, %v89
    %v91 = vrot.slane %v90, 2
    %v92 = vadd.f32 %v90, %v91
    %v93 = vrot.slane %v92, 1
    %v94 = vadd.f32 %v92, %v93
    %v95 = vsel %vm73, %v47, 0.0
    %v96 = vrot.slane %v95, 4
    %v97 = vadd.f32 %v95, %v96
    %v98 = vrot.slane %v97, 2
    %v99 = vadd.f32 %v97, %v98
    %v100 = vrot.slane %v99, 1
    %v101 = vadd.f32 %v99, %v100
    %v102 = vsel %vm73, %v55, 0.0
    %v103 = vrot.slane %v102, 4
    %v104 = vadd.f32 %v102, %v103
    %v105 = vrot.slane %v104, 2
    %v106 = vadd.f32 %v104, %v105
    %v107 = vrot.slane %v106, 1
    %v108 = vadd.f32 %v106, %v107
    %v109 = vsel %vm73, %v63, 0.0
    %v110 = vrot.slane %v109, 4
    %v111 = vadd.f32 %v109, %v110
    %v112 = vrot.slane %v111, 2
    %v113 = vadd.f32 %v111, %v112
    %v114 = vrot.slane %v113, 1
    %v115 = vadd.f32 %v113, %v114
    %v116 = vsel %vm73, %v62, 0.0
    %v117 = vrot.slane %v116, 4
    %v118 = vadd.f32 %v116, %v117
    %v119 = vrot.slane %v118, 2
    %v120 = vadd.f32 %v118, %v119
    %v121 = vrot.slane %v120, 1
    %v122 = vadd.f32 %v120, %v121
    %v123 = vsel %vm73, %v64, 0.0
    %v124 = vrot.slane %v123, 4
    %v125 = vadd.f32 %v123, %v124
    %v126 = vrot.slane %v125, 2
    %v127 = vadd.f32 %v125, %v126
    %v128 = vrot.slane %v127, 1
    %v129 = vadd.f32 %v127, %v128
    %v138 = vcombine.low %v80, %v87
    %v139 = vcombine.low %v94, %v101
    %v140 = vcombine.low %v108, %v115
    %v141 = vcombine.low %v122, %v129
    %v143 = vunpack.c.l.s4 1966171168
    %v144 = vunpack.c.0.s8 %v143
    %v145 = vlaneseq
    %v146 = vshrl.u32 %v145, 7
    %v147 = vsub.s32 %v144, %v146
    %v148 = vrot.slane %v138, %v147
    %v150 = vunpack.c.l.s4 1966171168
    %v151 = vunpack.c.0.s8 %v150
    %v152 = vlaneseq
    %v153 = vshrl.u32 %v152, 7
    %v154 = vsub.s32 %v151, %v153
    %v155 = vrot.slane %v139, %v154
    %v157 = vunpack.c.l.s4 1966171168
    %v158 = vunpack.c.0.s8 %v157
    %v159 = vlaneseq
    %v160 = vshrl.u32 %v159, 7
    %v161 = vsub.s32 %v158, %v160
    %v162 = vrot.slane %v140, %v161
    %v164 = vunpack.c.l.s4 1966171168
    %v165 = vunpack.c.0.s8 %v164
    %v166 = vlaneseq
    %v167 = vshrl.u32 %v166, 7
    %v168 = vsub.s32 %v165, %v167
    %v169 = vrot.slane %v141, %v168
    %v170 = vcombine.low %v148, %v155
    %v171 = vcombine.low %v162, %v169
    %v173 = vunpack.c.l.s4 1966171168
    %v174 = vunpack.c.0.s8 %v173
    %v175 = vlaneseq
    %v176 = vshrl.u32 %v175, 7
    %v177 = vsub.s32 %v174, %v176
    %v178 = vrot.slane %v170, %v177
    %v180 = vunpack.c.l.s4 1966171168
    %v181 = vunpack.c.0.s8 %v180
    %v182 = vlaneseq
    %v183 = vshrl.u32 %v182, 7
    %v184 = vsub.s32 %v181, %v183
    %v185 = vrot.slane %v171, %v184
    %v186 = vcombine.low %v178, %v185
    %v188 = vadd.f32 %v28, %v186
    %189 = vst [vmem:[#allocation2] sm:$0xff] %v188
    // Predicated region
    $region14: #{tpu_custom_call.1} parent=1 // pred_check
      %p190 = pneg %p21
    $region15: #{tpu_custom_call.1} parent=1 // pred_check_branch
      %192 = sbr.rel (%p190) target = $region17
    $region16: #{tpu_custom_call.1} parent=1 // pred_region
      %v193 = vld [vmem:[#allocation2] sm:$0xff]
      %v194 = vmul.f32 %v193, 0.5
      %195 = vst [vmem:[#allocation6] sm:$0xff] %v194
    $region17: #{tpu_custom_call.1} parent=1 // pred_fallthru
      _
    // Predicated region
    $region18: #{tpu_custom_call.1} parent=1 // pred_check
      _
    $region19: #{tpu_custom_call.1} parent=1 // pred_check_branch
      %197 = sbr.rel (0) target = $region21
    $region20: #{tpu_custom_call.1} parent=1 // pred_region
      %s199 = ssub.s32 128, 128
      %200 = vsyncadd [#allocation5], %s199
      %s202 = sshll.u32 [#allocation6], 4
      %s203 = int_to_ptr.vmem [resolvable:$true] %s202
      %205 = dma.vmem_to_hbm [thread:$0]  %s203, 128, %s1, [#allocation5]
    $region21: #{tpu_custom_call.1} parent=1 // pred_fallthru
      _
    // Predicated region
    $region22: #{tpu_custom_call.1} parent=1 // pred_check
      _
    $region23: #{tpu_custom_call.1} parent=1 // pred_check_branch
      %207 = sbr.rel (0) target = $region25
    $region24: #{tpu_custom_call.1} parent=1 // pred_region
      %208 = dma.done [#allocation5], 128
    $region25: #{tpu_custom_call.1} parent=1 // pred_fallthru
      _
    %209 = vsyncpa [#allocation4], 1
    %210 = vsyncpa [#allocation5], 1

</llo_original>
